<compile_context>
chip_gen: v6e
topology: v6e:2x2x1
jax: 0.10.0
libtpu: 0.0.40
codegen_flags: <defaults>
</compile_context>

<pallas_src>
import functools

import jax
import jax.numpy as jnp
from jax.experimental import pallas as pl
from jax.experimental.pallas import tpu as pltpu


def _attention_kernel(x_ref, wq_ref, wk_ref, wv_ref, o_ref, *,
                      heads, d_model, bf16_probs):
    """One batch tile of multi-head self-attention.

    x_ref : (b_tile, N, Dp)  compute-dtype activations (Dp = D padded to a 128 multiple)
    w*_ref: (Dp, Dp)         compute-dtype projections (softmax scale folded into W_q)
    o_ref : (b_tile, N, Dp)  output block (padded lanes written as zeros)
    """
    bt, n, d_pad = x_ref.shape
    dh = d_model // heads
    rows = bt * n

    # Collapse (b_tile, N) into one row axis (lane dim untouched) so each
    # projection is ONE lane-dense MXU matmul instead of `heads` tiny ones.
    x2 = x_ref[...].reshape(rows, d_pad)

    def project(w_ref):
        # f32 accumulation on the MXU; explicit downcast afterwards (VPU op
        # hidden under the matmul).
        acc = jnp.dot(x2, w_ref[...], preferred_element_type=jnp.float32)
        return acc.astype(jnp.bfloat16)

    q = project(wq_ref)          # (rows, Dp); softmax scale already folded into W_q
    k = project(wk_ref)
    v = project(wv_ref)

    p_dtype = jnp.bfloat16 if bf16_probs else jnp.float32

    head_outs = []
    for h in range(heads):                      # static unroll; heads is small
        sl = slice(h * dh, (h + 1) * dh)        # static lane slice inside the true D
        qh = q[:, sl].reshape(bt, n, dh)        # split leading rows only (safe reshape)
        kh = k[:, sl].reshape(bt, n, dh)
        vh = v[:, sl].reshape(bt, n, dh)

        # Scores: contract over dh on both operands (leading-batch dot_general,
        # no materialized k.T), accumulated in f32.
        s = jnp.einsum("bnd,bmd->bnm", qh, kh,
                       preferred_element_type=jnp.float32)        # (bt, n, n)

        # Numerically-stable softmax over keys.  Row max / sum stay f32; the
        # exp / scaling / PV operand run in bf16 on v6e/v7x, f32 on v5e.
        s = s - jnp.max(s, axis=-1, keepdims=True)
        p = jnp.exp(s.astype(p_dtype))
        denom = jnp.sum(p.astype(jnp.float32), axis=-1, keepdims=True)
        # approx=True: EUP reciprocal (free slot); rows sum to 1 +/- ~1e-3 rel.
        p = p * pl.reciprocal(denom, approx=True).astype(p_dtype)

        # Attention-weighted values: bf16 operands, f32 accumulation.
        oh = jnp.einsum("bnm,bmd->bnd", p.astype(jnp.bfloat16), vh,
                        preferred_element_type=jnp.float32)       # (bt, n, dh)
        head_outs.append(oh.astype(o_ref.dtype))
        # dropout(p=0.0) on the attention weights is the identity — nothing to do.

    if d_pad > d_model:   # pad back to lane-dense width so the store is unmasked
        head_outs.append(jnp.zeros((bt, n, d_pad - d_model), dtype=o_ref.dtype))

    # Single merged, lane-dense (b_tile, N, Dp) store.
    o_ref[...] = jnp.concatenate(head_outs, axis=-1)


def _enable_bf16_probs_default():
    """Enable the bf16 softmax path only where VPU/EUP natively do bf16 (v6e/v7x)."""
    try:
        kind = jax.devices()[0].device_kind.lower()
    except Exception:
        return False
    return any(tag in kind for tag in ("v6", "v7", "7x"))


def interaction_attention(x, w_qkv, *, heads,
                          compute_dtype=jnp.bfloat16,
                          out_dtype=None,
                          b_tile=None,
                          bf16_probs=None):
    """x: (B, N, D) float32; w_qkv: (D, 3D) (= torch Linear weight (3D, D), transposed)."""
    B, N, D = x.shape
    assert D % heads == 0, "dim must be divisible by heads"
    dim_head = D // heads
    scale = dim_head ** (-0.5)
    if out_dtype is None:
        # Pass out_dtype=jnp.bfloat16 to halve HBM writeback (useful on v5e)
        # when the consumer tolerates it; default keeps the module's f32 output.
        out_dtype = x.dtype
    if bf16_probs is None:
        bf16_probs = _enable_bf16_probs_default()

    # --- one-time weight prep ------------------------------------------------
    # torch: qkv = x @ W^T then chunk(3, dim=-1) -> q | k | v column blocks.
    w_q = (w_qkv[:, :D] * scale).astype(compute_dtype)   # fold softmax scale into W_q
    w_k = w_qkv[:, D:2 * D].astype(compute_dtype)
    w_v = w_qkv[:, 2 * D:].astype(compute_dtype)
    x_c = x.astype(compute_dtype)

    # --- lane-dense padding of the model dim ----------------------------------
    # With D < 128 every load/store would be a masked sub-128-lane access; pad D
    # to a multiple of 128 so x loads, the projections and the single merged
    # output store are lane-dense.  Padded lanes are zero and sliced off after.
    d_pad = ((D + 127) // 128) * 128
    if d_pad != D:
        pad = d_pad - D
        x_c = jnp.pad(x_c, ((0, 0), (0, 0), (0, pad)))
        w_q = jnp.pad(w_q, ((0, pad), (0, pad)))
        w_k = jnp.pad(w_k, ((0, pad), (0, pad)))
        w_v = jnp.pad(w_v, ((0, pad), (0, pad)))

    # --- batch tiling ----------------------------------------------------------
    # Block several batch elements per grid step (amortize per-step overhead) but
    # keep >= 2 grid steps when possible so both TensorCores get work on v7x.
    if b_tile is None:
        b_tile = 1
        if N % 8 == 0:
            for cand in range(max(1, B // 2), 0, -1):
                if B % cand == 0:
                    b_tile = cand
                    break
    assert B % b_tile == 0, "b_tile must divide the batch"
    grid = (B // b_tile,)

    # --- scoped-VMEM budget derived from actual block sizes (v7x cap: 64 MiB) --
    c_bytes = jnp.dtype(compute_dtype).itemsize
    o_bytes = jnp.dtype(out_dtype).itemsize
    x_blk = b_tile * N * d_pad * c_bytes
    o_blk = b_tile * N * d_pad * o_bytes
    w_blk = 3 * d_pad * d_pad * c_bytes
    vmem_limit = int(min(64 * 2 ** 20,
                         max(16 * 2 ** 20,
                             4 * (x_blk + o_blk) + 2 * w_blk + 8 * 2 ** 20)))

    kernel = functools.partial(_attention_kernel, heads=heads, d_model=D,
                               bf16_probs=bool(bf16_probs))

    out = pl.pallas_call(
        kernel,
        out_shape=jax.ShapeDtypeStruct((B, N, d_pad), out_dtype),
        grid_spec=pltpu.PrefetchScalarGridSpec(
            num_scalar_prefetch=0,
            grid=grid,
            in_specs=[
                pl.BlockSpec((b_tile, N, d_pad), lambda b: (b, 0, 0)),
                # Constant index_map -> weights DMA'd once, resident in VMEM.
                # NOTE(v7x): at large D, add pipeline_mode=pl.Buffered(1) here to
                # drop the unused second pipeline buffer, and/or stream D in tiles.
                pl.BlockSpec((d_pad, d_pad), lambda b: (0, 0)),
                pl.BlockSpec((d_pad, d_pad), lambda b: (0, 0)),
                pl.BlockSpec((d_pad, d_pad), lambda b: (0, 0)),
            ],
            out_specs=pl.BlockSpec((b_tile, N, d_pad), lambda b: (b, 0, 0)),
        ),
        compiler_params=pltpu.CompilerParams(
            dimension_semantics=("parallel",),
            vmem_limit_bytes=vmem_limit,
        ),
    )(x_c, w_q, w_k, w_v)

    if d_pad != D:
        out = out[:, :, :D]
    return out


def _reference(x, w_qkv, heads):
    """Plain-JAX f32 reference mirroring the PyTorch forward."""
    B, N, D = x.shape
    d = D // heads
    qkv = x @ w_qkv                                    # (B, N, 3D)
    q, k, v = jnp.split(qkv, 3, axis=-1)

    def to_heads(t):
        return t.reshape(B, N, heads, d).transpose(0, 2, 1, 3)

    q, k, v = map(to_heads, (q, k, v))
    dots = jnp.einsum("bhnd,bhmd->bhnm", q, k) * (d ** -0.5)
    attn = jax.nn.softmax(dots, axis=-1)
    out = jnp.einsum("bhnm,bhmd->bhnd", attn, v)
    return out.transpose(0, 2, 1, 3).reshape(B, N, D)


if __name__ == "__main__":
    B, N, D, HEADS = 2, 8, 32, 4

    key = jax.random.PRNGKey(0)
    kx, kw = jax.random.split(key)
    x = jax.random.normal(kx, (B, N, D), dtype=jnp.float32)
    # nn.Linear(dim, 3*dim, bias=False) with normal(0, 0.05) init; torch weight
    # is (3D, D) — kept pre-transposed here as (D, 3D).
    w_qkv = 0.05 * jax.random.normal(kw, (D, 3 * D), dtype=jnp.float32)

    out = interaction_attention(x, w_qkv, heads=HEADS)
    out = jax.block_until_ready(out)

    ref = _reference(x, w_qkv, HEADS)
    assert out.shape == (B, N, D)
    # bf16 MXU operands + EUP approximate reciprocal => relaxed tolerance vs
    # the exact f32 reference.
    assert jnp.allclose(out, ref, atol=2e-2, rtol=2e-2), (
        f"max abs err = {jnp.max(jnp.abs(out - ref))}")

    print("KERNEL_OK")
</pallas_src>

<mosaic_0001>
module attributes {stable_mosaic.version = 11 : i64} {
  func.func @_attention_kernel(%arg0: i32, %arg1: memref<1x8x128xbf16, #tpu.memory_space<vmem>>, %arg2: memref<128x128xbf16, #tpu.memory_space<vmem>>, %arg3: memref<128x128xbf16, #tpu.memory_space<vmem>>, %arg4: memref<128x128xbf16, #tpu.memory_space<vmem>>, %arg5: memref<1x8x128xf32, #tpu.memory_space<vmem>>) attributes {dimension_semantics = [#tpu.dimension_semantics<parallel>], iteration_bounds = array<i64: 2>, scalar_prefetch = 0 : i64, scratch_operands = 0 : i64, tpu.core_type = #tpu.core_type<tc>, window_params = [{transform_indices = @transform_0, window_bounds = array<i64: 1, 8, 128>}, {pipeline_mode = #tpu.pipeline_mode<synchronous>, transform_indices = @transform_1, window_bounds = array<i64: 128, 128>}, {pipeline_mode = #tpu.pipeline_mode<synchronous>, transform_indices = @transform_2, window_bounds = array<i64: 128, 128>}, {pipeline_mode = #tpu.pipeline_mode<synchronous>, transform_indices = @transform_3, window_bounds = array<i64: 128, 128>}, {transform_indices = @transform_4, window_bounds = array<i64: 1, 8, 128>}]} {
    %c0 = arith.constant 0 : index
    %c0_0 = arith.constant 0 : index
    %c0_1 = arith.constant 0 : index
    %0 = vector.load %arg1[%c0, %c0_0, %c0_1] : memref<1x8x128xbf16, #tpu.memory_space<vmem>>, vector<1x8x128xbf16>
    %1 = vector.shape_cast %0 : vector<1x8x128xbf16> to vector<8x128xbf16>
    %c0_2 = arith.constant 0 : index
    %c0_3 = arith.constant 0 : index
    %2 = vector.load %arg2[%c0_2, %c0_3] : memref<128x128xbf16, #tpu.memory_space<vmem>>, vector<128x128xbf16>
    %cst = arith.constant dense<0.000000e+00> : vector<8x128xf32>
    %3 = tpu.matmul %1, %2, %cst {dimension_numbers = #tpu.dot_dimension_numbers<[1], [0], [0], [1], [0, 0, 1, 1], [], []>} : vector<8x128xbf16>, vector<128x128xbf16>, vector<8x128xf32> -> vector<8x128xf32>
    %4 = arith.truncf %3 : vector<8x128xf32> to vector<8x128xbf16>
    %c0_4 = arith.constant 0 : index
    %c0_5 = arith.constant 0 : index
    %5 = vector.load %arg3[%c0_4, %c0_5] : memref<128x128xbf16, #tpu.memory_space<vmem>>, vector<128x128xbf16>
    %cst_6 = arith.constant dense<0.000000e+00> : vector<8x128xf32>
    %6 = tpu.matmul %1, %5, %cst_6 {dimension_numbers = #tpu.dot_dimension_numbers<[1], [0], [0], [1], [0, 0, 1, 1], [], []>} : vector<8x128xbf16>, vector<128x128xbf16>, vector<8x128xf32> -> vector<8x128xf32>
    %7 = arith.truncf %6 : vector<8x128xf32> to vector<8x128xbf16>
    %c0_7 = arith.constant 0 : index
    %c0_8 = arith.constant 0 : index
    %8 = vector.load %arg4[%c0_7, %c0_8] : memref<128x128xbf16, #tpu.memory_space<vmem>>, vector<128x128xbf16>
    %cst_9 = arith.constant dense<0.000000e+00> : vector<8x128xf32>
    %9 = tpu.matmul %1, %8, %cst_9 {dimension_numbers = #tpu.dot_dimension_numbers<[1], [0], [0], [1], [0, 0, 1, 1], [], []>} : vector<8x128xbf16>, vector<128x128xbf16>, vector<8x128xf32> -> vector<8x128xf32>
    %10 = arith.truncf %9 : vector<8x128xf32> to vector<8x128xbf16>
    %11 = vector.extract_strided_slice %4 {offsets = [0, 0], sizes = [8, 8], strides = [1, 1]} : vector<8x128xbf16> to vector<8x8xbf16>
    %12 = vector.shape_cast %11 : vector<8x8xbf16> to vector<1x8x8xbf16>
    %13 = vector.extract_strided_slice %7 {offsets = [0, 0], sizes = [8, 8], strides = [1, 1]} : vector<8x128xbf16> to vector<8x8xbf16>
    %14 = vector.shape_cast %13 : vector<8x8xbf16> to vector<1x8x8xbf16>
    %15 = vector.extract_strided_slice %10 {offsets = [0, 0], sizes = [8, 8], strides = [1, 1]} : vector<8x128xbf16> to vector<8x8xbf16>
    %16 = vector.shape_cast %15 : vector<8x8xbf16> to vector<1x8x8xbf16>
    "tpu.trace_start"() <{level = 10 : i32, message = "bnd,bmd->bnm"}> : () -> ()
    %cst_10 = arith.constant dense<0.000000e+00> : vector<1x8x8xf32>
    %17 = tpu.matmul %12, %14, %cst_10 {dimension_numbers = #tpu.dot_dimension_numbers<[2], [2], [1], [1], [0, 0, 0, 1, 1, 1], [0], [0]>} : vector<1x8x8xbf16>, vector<1x8x8xbf16>, vector<1x8x8xf32> -> vector<1x8x8xf32>
    "tpu.trace_stop"() : () -> ()
    %cst_11 = arith.constant dense<0xFF800000> : vector<1x8xf32>
    %18 = vector.multi_reduction <maximumf>, %17, %cst_11 [2] : vector<1x8x8xf32> to vector<1x8xf32>
    %19 = vector.shape_cast %18 : vector<1x8xf32> to vector<1x8x1xf32>
    %20 = vector.broadcast %19 : vector<1x8x1xf32> to vector<1x8x8xf32>
    %21 = arith.subf %17, %20 : vector<1x8x8xf32>
    %22 = math.exp %21 : vector<1x8x8xf32>
    %cst_12 = arith.constant dense<0.000000e+00> : vector<1x8xf32>
    %23 = vector.multi_reduction <add>, %22, %cst_12 [2] : vector<1x8x8xf32> to vector<1x8xf32>
    %24 = vector.shape_cast %23 : vector<1x8xf32> to vector<1x8x1xf32>
    %25 = tpu.reciprocal %24 {approx = true} : vector<1x8x1xf32> -> vector<1x8x1xf32>
    %26 = vector.broadcast %25 : vector<1x8x1xf32> to vector<1x8x8xf32>
    %27 = arith.mulf %22, %26 : vector<1x8x8xf32>
    %28 = arith.truncf %27 : vector<1x8x8xf32> to vector<1x8x8xbf16>
    "tpu.trace_start"() <{level = 10 : i32, message = "bnm,bmd->bnd"}> : () -> ()
    %cst_13 = arith.constant dense<0.000000e+00> : vector<1x8x8xf32>
    %29 = tpu.matmul %28, %16, %cst_13 {dimension_numbers = #tpu.dot_dimension_numbers<[2], [1], [1], [2], [0, 0, 0, 1, 1, 2], [0], [0]>} : vector<1x8x8xbf16>, vector<1x8x8xbf16>, vector<1x8x8xf32> -> vector<1x8x8xf32>
    "tpu.trace_stop"() : () -> ()
    %30 = vector.extract_strided_slice %4 {offsets = [0, 8], sizes = [8, 8], strides = [1, 1]} : vector<8x128xbf16> to vector<8x8xbf16>
    %31 = vector.shape_cast %30 : vector<8x8xbf16> to vector<1x8x8xbf16>
    %32 = vector.extract_strided_slice %7 {offsets = [0, 8], sizes = [8, 8], strides = [1, 1]} : vector<8x128xbf16> to vector<8x8xbf16>
    %33 = vector.shape_cast %32 : vector<8x8xbf16> to vector<1x8x8xbf16>
    %34 = vector.extract_strided_slice %10 {offsets = [0, 8], sizes = [8, 8], strides = [1, 1]} : vector<8x128xbf16> to vector<8x8xbf16>
    %35 = vector.shape_cast %34 : vector<8x8xbf16> to vector<1x8x8xbf16>
    "tpu.trace_start"() <{level = 10 : i32, message = "bnd,bmd->bnm"}> : () -> ()
    %cst_14 = arith.constant dense<0.000000e+00> : vector<1x8x8xf32>
    %36 = tpu.matmul %31, %33, %cst_14 {dimension_numbers = #tpu.dot_dimension_numbers<[2], [2], [1], [1], [0, 0, 0, 1, 1, 1], [0], [0]>} : vector<1x8x8xbf16>, vector<1x8x8xbf16>, vector<1x8x8xf32> -> vector<1x8x8xf32>
    "tpu.trace_stop"() : () -> ()
    %cst_15 = arith.constant dense<0xFF800000> : vector<1x8xf32>
    %37 = vector.multi_reduction <maximumf>, %36, %cst_15 [2] : vector<1x8x8xf32> to vector<1x8xf32>
    %38 = vector.shape_cast %37 : vector<1x8xf32> to vector<1x8x1xf32>
    %39 = vector.broadcast %38 : vector<1x8x1xf32> to vector<1x8x8xf32>
    %40 = arith.subf %36, %39 : vector<1x8x8xf32>
    %41 = math.exp %40 : vector<1x8x8xf32>
    %cst_16 = arith.constant dense<0.000000e+00> : vector<1x8xf32>
    %42 = vector.multi_reduction <add>, %41, %cst_16 [2] : vector<1x8x8xf32> to vector<1x8xf32>
    %43 = vector.shape_cast %42 : vector<1x8xf32> to vector<1x8x1xf32>
    %44 = tpu.reciprocal %43 {approx = true} : vector<1x8x1xf32> -> vector<1x8x1xf32>
    %45 = vector.broadcast %44 : vector<1x8x1xf32> to vector<1x8x8xf32>
    %46 = arith.mulf %41, %45 : vector<1x8x8xf32>
    %47 = arith.truncf %46 : vector<1x8x8xf32> to vector<1x8x8xbf16>
    "tpu.trace_start"() <{level = 10 : i32, message = "bnm,bmd->bnd"}> : () -> ()
    %cst_17 = arith.constant dense<0.000000e+00> : vector<1x8x8xf32>
    %48 = tpu.matmul %47, %35, %cst_17 {dimension_numbers = #tpu.dot_dimension_numbers<[2], [1], [1], [2], [0, 0, 0, 1, 1, 2], [0], [0]>} : vector<1x8x8xbf16>, vector<1x8x8xbf16>, vector<1x8x8xf32> -> vector<1x8x8xf32>
    "tpu.trace_stop"() : () -> ()
    %49 = vector.extract_strided_slice %4 {offsets = [0, 16], sizes = [8, 8], strides = [1, 1]} : vector<8x128xbf16> to vector<8x8xbf16>
    %50 = vector.shape_cast %49 : vector<8x8xbf16> to vector<1x8x8xbf16>
    %51 = vector.extract_strided_slice %7 {offsets = [0, 16], sizes = [8, 8], strides = [1, 1]} : vector<8x128xbf16> to vector<8x8xbf16>
    %52 = vector.shape_cast %51 : vector<8x8xbf16> to vector<1x8x8xbf16>
    %53 = vector.extract_strided_slice %10 {offsets = [0, 16], sizes = [8, 8], strides = [1, 1]} : vector<8x128xbf16> to vector<8x8xbf16>
    %54 = vector.shape_cast %53 : vector<8x8xbf16> to vector<1x8x8xbf16>
    "tpu.trace_start"() <{level = 10 : i32, message = "bnd,bmd->bnm"}> : () -> ()
    %cst_18 = arith.constant dense<0.000000e+00> : vector<1x8x8xf32>
    %55 = tpu.matmul %50, %52, %cst_18 {dimension_numbers = #tpu.dot_dimension_numbers<[2], [2], [1], [1], [0, 0, 0, 1, 1, 1], [0], [0]>} : vector<1x8x8xbf16>, vector<1x8x8xbf16>, vector<1x8x8xf32> -> vector<1x8x8xf32>
    "tpu.trace_stop"() : () -> ()
    %cst_19 = arith.constant dense<0xFF800000> : vector<1x8xf32>
    %56 = vector.multi_reduction <maximumf>, %55, %cst_19 [2] : vector<1x8x8xf32> to vector<1x8xf32>
    %57 = vector.shape_cast %56 : vector<1x8xf32> to vector<1x8x1xf32>
    %58 = vector.broadcast %57 : vector<1x8x1xf32> to vector<1x8x8xf32>
    %59 = arith.subf %55, %58 : vector<1x8x8xf32>
    %60 = math.exp %59 : vector<1x8x8xf32>
    %cst_20 = arith.constant dense<0.000000e+00> : vector<1x8xf32>
    %61 = vector.multi_reduction <add>, %60, %cst_20 [2] : vector<1x8x8xf32> to vector<1x8xf32>
    %62 = vector.shape_cast %61 : vector<1x8xf32> to vector<1x8x1xf32>
    %63 = tpu.reciprocal %62 {approx = true} : vector<1x8x1xf32> -> vector<1x8x1xf32>
    %64 = vector.broadcast %63 : vector<1x8x1xf32> to vector<1x8x8xf32>
    %65 = arith.mulf %60, %64 : vector<1x8x8xf32>
    %66 = arith.truncf %65 : vector<1x8x8xf32> to vector<1x8x8xbf16>
    "tpu.trace_start"() <{level = 10 : i32, message = "bnm,bmd->bnd"}> : () -> ()
    %cst_21 = arith.constant dense<0.000000e+00> : vector<1x8x8xf32>
    %67 = tpu.matmul %66, %54, %cst_21 {dimension_numbers = #tpu.dot_dimension_numbers<[2], [1], [1], [2], [0, 0, 0, 1, 1, 2], [0], [0]>} : vector<1x8x8xbf16>, vector<1x8x8xbf16>, vector<1x8x8xf32> -> vector<1x8x8xf32>
    "tpu.trace_stop"() : () -> ()
    %68 = vector.extract_strided_slice %4 {offsets = [0, 24], sizes = [8, 8], strides = [1, 1]} : vector<8x128xbf16> to vector<8x8xbf16>
    %69 = vector.shape_cast %68 : vector<8x8xbf16> to vector<1x8x8xbf16>
    %70 = vector.extract_strided_slice %7 {offsets = [0, 24], sizes = [8, 8], strides = [1, 1]} : vector<8x128xbf16> to vector<8x8xbf16>
    %71 = vector.shape_cast %70 : vector<8x8xbf16> to vector<1x8x8xbf16>
    %72 = vector.extract_strided_slice %10 {offsets = [0, 24], sizes = [8, 8], strides = [1, 1]} : vector<8x128xbf16> to vector<8x8xbf16>
    %73 = vector.shape_cast %72 : vector<8x8xbf16> to vector<1x8x8xbf16>
    "tpu.trace_start"() <{level = 10 : i32, message = "bnd,bmd->bnm"}> : () -> ()
    %cst_22 = arith.constant dense<0.000000e+00> : vector<1x8x8xf32>
    %74 = tpu.matmul %69, %71, %cst_22 {dimension_numbers = #tpu.dot_dimension_numbers<[2], [2], [1], [1], [0, 0, 0, 1, 1, 1], [0], [0]>} : vector<1x8x8xbf16>, vector<1x8x8xbf16>, vector<1x8x8xf32> -> vector<1x8x8xf32>
    "tpu.trace_stop"() : () -> ()
    %cst_23 = arith.constant dense<0xFF800000> : vector<1x8xf32>
    %75 = vector.multi_reduction <maximumf>, %74, %cst_23 [2] : vector<1x8x8xf32> to vector<1x8xf32>
    %76 = vector.shape_cast %75 : vector<1x8xf32> to vector<1x8x1xf32>
    %77 = vector.broadcast %76 : vector<1x8x1xf32> to vector<1x8x8xf32>
    %78 = arith.subf %74, %77 : vector<1x8x8xf32>
    %79 = math.exp %78 : vector<1x8x8xf32>
    %cst_24 = arith.constant dense<0.000000e+00> : vector<1x8xf32>
    %80 = vector.multi_reduction <add>, %79, %cst_24 [2] : vector<1x8x8xf32> to vector<1x8xf32>
    %81 = vector.shape_cast %80 : vector<1x8xf32> to vector<1x8x1xf32>
    %82 = tpu.reciprocal %81 {approx = true} : vector<1x8x1xf32> -> vector<1x8x1xf32>
    %83 = vector.broadcast %82 : vector<1x8x1xf32> to vector<1x8x8xf32>
    %84 = arith.mulf %79, %83 : vector<1x8x8xf32>
    %85 = arith.truncf %84 : vector<1x8x8xf32> to vector<1x8x8xbf16>
    "tpu.trace_start"() <{level = 10 : i32, message = "bnm,bmd->bnd"}> : () -> ()
    %cst_25 = arith.constant dense<0.000000e+00> : vector<1x8x8xf32>
    %86 = tpu.matmul %85, %73, %cst_25 {dimension_numbers = #tpu.dot_dimension_numbers<[2], [1], [1], [2], [0, 0, 0, 1, 1, 2], [0], [0]>} : vector<1x8x8xbf16>, vector<1x8x8xbf16>, vector<1x8x8xf32> -> vector<1x8x8xf32>
    %cst_26 = arith.constant 0.000000e+00 : f32
    "tpu.trace_stop"() : () -> ()
    %87 = vector.broadcast %cst_26 : f32 to vector<1x8x96xf32>
    %88 = tpu.concatenate %29, %48, %67, %86, %87 in 2 : vector<1x8x8xf32>, vector<1x8x8xf32>, vector<1x8x8xf32>, vector<1x8x8xf32>, vector<1x8x96xf32> -> vector<1x8x128xf32>
    %c0_27 = arith.constant 0 : index
    %c0_28 = arith.constant 0 : index
    %c0_29 = arith.constant 0 : index
    %89 = vector.load %arg5[%c0_27, %c0_28, %c0_29] : memref<1x8x128xf32, #tpu.memory_space<vmem>>, vector<1x8x128xf32>
    tpu.vector_store %arg5[%c0_27, %c0_28, %c0_29], %88 {strides = array<i32>} : memref<1x8x128xf32, #tpu.memory_space<vmem>>, vector<1x8x128xf32>,
    return
  }
  func.func @transform_0(%arg0: i32) -> (i32, i32, i32) {
    %c0_i32 = arith.constant 0 : i32
    %c0_i32_0 = arith.constant 0 : i32
    %c0_i32_1 = arith.constant 0 : i32
    return %arg0, %c0_i32, %c0_i32_0 : i32, i32, i32
  }
  func.func @transform_1(%arg0: i32) -> (i32, i32) {
    %c0_i32 = arith.constant 0 : i32
    %c0_i32_0 = arith.constant 0 : i32
    %c0_i32_1 = arith.constant 0 : i32
    return %c0_i32, %c0_i32_0 : i32, i32
  }
  func.func @transform_2(%arg0: i32) -> (i32, i32) {
    %c0_i32 = arith.constant 0 : i32
    %c0_i32_0 = arith.constant 0 : i32
    %c0_i32_1 = arith.constant 0 : i32
    return %c0_i32, %c0_i32_0 : i32, i32
  }
  func.func @transform_3(%arg0: i32) -> (i32, i32) {
    %c0_i32 = arith.constant 0 : i32
    %c0_i32_0 = arith.constant 0 : i32
    %c0_i32_1 = arith.constant 0 : i32
    return %c0_i32, %c0_i32_0 : i32, i32
  }
  func.func @transform_4(%arg0: i32) -> (i32, i32, i32) {
    %c0_i32 = arith.constant 0 : i32
    %c0_i32_0 = arith.constant 0 : i32
    %c0_i32_1 = arith.constant 0 : i32
    return %arg0, %c0_i32, %c0_i32_0 : i32, i32, i32
  }
}

</mosaic_0001>

<llo_original>
// kernel: tpu_custom_call.1
$region0: #{tpu_custom_call.1}
  #allocation0 [shape = 'u32[]', space=smem, size = 0x4, offset = 0x4, fixed_abs, tag = 'smem constant byte address 0x4 - core index']
  #allocation1 [shape = 'u32[144,128]{1,0:T(1,128)}', space=vmem, size = 0x12000, scoped, tag = 'internal scratch']
  %s0 = inlined_call_operand.hbm [shape: bf16[2,8,128], index: 0, kind: input, shape index: {}]
  %s1 = inlined_call_operand.hbm [shape: bf16[128,128], index: 1, kind: input, shape index: {}]
  %s2 = inlined_call_operand.hbm [shape: bf16[128,128], index: 2, kind: input, shape index: {}]
  %s3 = inlined_call_operand.hbm [shape: bf16[128,128], index: 3, kind: input, shape index: {}]
  %s4 = inlined_call_operand.hbm [shape: f32[2,8,128], index: 4, kind: output, shape index: {}]
  %s5 = sld [smem:[#allocation0]]
  $region65: #{tpu_custom_call.1} parent=0
    _
  %s7 = ssub.s32 1, %s5
  %s8 = scalar_select 0, %s7, %s5
  $region1: #{tpu_custom_call.1} parent=0
    #allocation2 [shape = 'u8[4096]{0}', space=vmem, size = 0x1000, scoped, tag = 'input window, operand 0']
    #allocation3 [shape = 's32[2]{0}', space=sflag, size = 0x8, scoped, tag = 'scoped memory for tpu_custom_call.1']
    #allocation4 [shape = 's32[2]{0}', space=sflag, size = 0x8, scoped, tag = 'scoped memory for tpu_custom_call.1']
    #allocation5 [shape = 'u8[32768]{0}', space=vmem, size = 0x8000, scoped, tag = 'input window, operand 1, single buffered']
    #allocation6 [shape = 's32[1]{0}', space=sflag, size = 0x4, scoped, tag = 'scoped memory for tpu_custom_call.1']
    #allocation7 [shape = 'u8[32768]{0}', space=vmem, size = 0x8000, scoped, tag = 'input window, operand 2, single buffered']
    #allocation8 [shape = 'u8[32768]{0}', space=vmem, size = 0x8000, scoped, tag = 'input window, operand 3, single buffered']
    #allocation9 [shape = 's32[1]{0}', space=sflag, size = 0x4, scoped, tag = 'scoped memory for tpu_custom_call.1']
    #allocation10 [shape = 'u8[8192]{0}', space=vmem, size = 0x2000, scoped, tag = 'output window, operand 0']
    %9 = vsyncpa [#allocation3], 0
    %s10 = scalar_lea.sflag [#allocation3], 1
    %11 = vsyncpa %s10, 0
    %12 = vsyncpa [#allocation6], 0
    %13 = vsyncpa [#allocation9], 0
    %14 = vsyncpa [#allocation4], 0
    %s15 = scalar_lea.sflag [#allocation4], 1
    %16 = vsyncpa %s15, 0
    loop: start=0, step=1, limit=4
    $region2: #{tpu_custom_call.1} parent=1 // loop_pre_header
      _
    $region3: #{tpu_custom_call.1} parent=1 // loop_header
      %s18 = sphi 0, %s22
      %p19 = scmp.ge.s32.totalorder %s18, 4
      %s28 = sphi 0, %s30
      %s31 = sphi 0, %s28
      %s32 = sphi 0, %s31
      %s48 = sphi 0, %s32
      %s52 = sphi 0, %s52
      %s54 = sphi 0, %s52
      %s55 = sphi 0, %s54
      %s69 = sphi 0, %s55
      %s73 = sphi 0, %s73
      %s75 = sphi 0, %s73
      %s76 = sphi 0, %s75
      %s90 = sphi 0, %s76
      %s94 = sphi 0, %s94
      %s96 = sphi 0, %s94
      %s97 = sphi 0, %s96
      %s111 = sphi 0, %s97
      %s117 = sphi 0, %s119
      %s120 = sphi 0, %s117
      %s121 = sphi 0, %s120
      %s137 = sphi 0, %s121
    $region4: #{tpu_custom_call.1} parent=1 // loop_header_branch
      %21 = sbr.rel (%p19) target = $region8
    $region5: #{tpu_custom_call.1} parent=1 // loop_body
      %s23 = ssub.s32 %s18, 1
      %s24 = ssub.s32 %s18, 2
      %s25 = sadd.s32 %s18, 1
      %s26 = ssub.s32 %s18, %s25
      %p27 = scmp.eq.s32.totalorder %s26, 0
      %s29 = sadd.s32 %s28, 1
      %s30 = scalar_select %p27, %s28, %s29
      %p33 = pneg %p27
      %p34 = scmp.eq.s32.totalorder %s18, 1
      %p35 = por %p33, %p34
      %p36 = scmp.ne.s32.totalorder %s28, %s31
      %p37 = scmp.eq.s32.totalorder %s18, 0
      %p38 = por %p36, %p37
      %p39 = scmp.ne.s32.totalorder %s28, %s31
      %p40 = scmp.eq.s32.totalorder %s23, 1
      %p41 = por %p39, %p40
      %p42 = scmp.ne.s32.totalorder %s31, %s32
      %p43 = scmp.eq.s32.totalorder %s23, 0
      %p44 = por %p42, %p43
      %p45 = scmp.ne.s32.totalorder %s31, %s32
      %p46 = scmp.eq.s32.totalorder %s24, 1
      %p47 = por %p45, %p46
      %p49 = scmp.ne.s32.totalorder %s32, %s48
      %p50 = scmp.eq.s32.totalorder %s24, 0
      %p51 = por %p49, %p50
      %s53 = sadd.s32 %s52, 1
      %p56 = scmp.eq.s32.totalorder %s18, 1
      %p57 = scmp.ne.s32.totalorder %s52, %s54
      %p58 = scmp.eq.s32.totalorder %s18, 0
      %p59 = por %p57, %p58
      %p60 = scmp.ne.s32.totalorder %s52, %s54
      %p61 = scmp.eq.s32.totalorder %s23, 1
      %p62 = por %p60, %p61
      %p63 = scmp.ne.s32.totalorder %s54, %s55
      %p64 = scmp.eq.s32.totalorder %s23, 0
      %p65 = por %p63, %p64
      %p66 = scmp.ne.s32.totalorder %s54, %s55
      %p67 = scmp.eq.s32.totalorder %s24, 1
      %p68 = por %p66, %p67
      %p70 = scmp.ne.s32.totalorder %s55, %s69
      %p71 = scmp.eq.s32.totalorder %s24, 0
      %p72 = por %p70, %p71
      %s74 = sadd.s32 %s73, 1
      %p77 = scmp.eq.s32.totalorder %s18, 1
      %p78 = scmp.ne.s32.totalorder %s73, %s75
      %p79 = scmp.eq.s32.totalorder %s18, 0
      %p80 = por %p78, %p79
      %p81 = scmp.ne.s32.totalorder %s73, %s75
      %p82 = scmp.eq.s32.totalorder %s23, 1
      %p83 = por %p81, %p82
      %p84 = scmp.ne.s32.totalorder %s75, %s76
      %p85 = scmp.eq.s32.totalorder %s23, 0
      %p86 = por %p84, %p85
      %p87 = scmp.ne.s32.totalorder %s75, %s76
      %p88 = scmp.eq.s32.totalorder %s24, 1
      %p89 = por %p87, %p88
      %p91 = scmp.ne.s32.totalorder %s76, %s90
      %p92 = scmp.eq.s32.totalorder %s24, 0
      %p93 = por %p91, %p92
      %s95 = sadd.s32 %s94, 1
      %p98 = scmp.eq.s32.totalorder %s18, 1
      %p99 = scmp.ne.s32.totalorder %s94, %s96
      %p100 = scmp.eq.s32.totalorder %s18, 0
      %p101 = por %p99, %p100
      %p102 = scmp.ne.s32.totalorder %s94, %s96
      %p103 = scmp.eq.s32.totalorder %s23, 1
      %p104 = por %p102, %p103
      %p105 = scmp.ne.s32.totalorder %s96, %s97
      %p106 = scmp.eq.s32.totalorder %s23, 0
      %p107 = por %p105, %p106
      %p108 = scmp.ne.s32.totalorder %s96, %s97
      %p109 = scmp.eq.s32.totalorder %s24, 1
      %p110 = por %p108, %p109
      %p112 = scmp.ne.s32.totalorder %s97, %s111
      %p113 = scmp.eq.s32.totalorder %s24, 0
      %p114 = por %p112, %p113
      %s115 = ssub.s32 %s18, %s25
      %p116 = scmp.eq.s32.totalorder %s115, 0
      %s118 = sadd.s32 %s117, 1
      %s119 = scalar_select %p116, %s117, %s118
      %p122 = pneg %p116
      %p123 = scmp.eq.s32.totalorder %s18, 1
      %p124 = por %p122, %p123
      %p125 = scmp.ne.s32.totalorder %s117, %s120
      %p126 = scmp.eq.s32.totalorder %s18, 0
      %p127 = por %p125, %p126
      %p128 = scmp.ne.s32.totalorder %s117, %s120
      %p129 = scmp.eq.s32.totalorder %s23, 1
      %p130 = por %p128, %p129
      %p131 = scmp.ne.s32.totalorder %s120, %s121
      %p132 = scmp.eq.s32.totalorder %s23, 0
      %p133 = por %p131, %p132
      %p134 = scmp.ne.s32.totalorder %s120, %s121
      %p135 = scmp.eq.s32.totalorder %s24, 1
      %p136 = por %p134, %p135
      %p138 = scmp.ne.s32.totalorder %s121, %s137
      %p139 = scmp.eq.s32.totalorder %s24, 0
      %p140 = por %p138, %p139
      %p141 = scmp.le.s32.totalorder 1, %s18
      %p142 = scmp.lt.s32.totalorder %s18, 3
      %p143 = pnand %p141, %p142
      %p144 = pneg %p143
      // Predicated region
      $region9: #{tpu_custom_call.1} parent=5 // pred_check
        _
      $region10: #{tpu_custom_call.1} parent=5 // pred_check_branch
        %146 = sbr.rel (%p143) target = $region12
      $region11: #{tpu_custom_call.1} parent=5 // pred_region
        %s147 = ssub.s32 %s18, 1
        // Predicated region
        $region13: #{tpu_custom_call.1} parent=11 // pred_check
          %p148 = pneg %p65
        $region14: #{tpu_custom_call.1} parent=11 // pred_check_branch
          %150 = sbr.rel (%p148) target = $region16
        $region15: #{tpu_custom_call.1} parent=11 // pred_region
          %s152 = ssub.s32 1024, 1024
          %153 = vsyncadd [#allocation6], %s152
          %s154 = sshll.u32 [#allocation5], 4
          %s155 = int_to_ptr.vmem [resolvable:$true] %s154
          %160 = dma.hbm_to_vmem [thread:$0]  %s1, 1024, %s155, [#allocation6], 64, 64, 4
        $region16: #{tpu_custom_call.1} parent=11 // pred_fallthru
          _
        // Predicated region
        $region17: #{tpu_custom_call.1} parent=11 // pred_check
          %p161 = pneg %p86
        $region18: #{tpu_custom_call.1} parent=11 // pred_check_branch
          %163 = sbr.rel (%p161) target = $region20
        $region19: #{tpu_custom_call.1} parent=11 // pred_region
          %s165 = ssub.s32 1024, 1024
          %166 = vsyncadd [#allocation6], %s165
          %s167 = sshll.u32 [#allocation7], 4
          %s168 = int_to_ptr.vmem [resolvable:$true] %s167
          %173 = dma.hbm_to_vmem [thread:$0]  %s2, 1024, %s168, [#allocation6], 64, 64, 4
        $region20: #{tpu_custom_call.1} parent=11 // pred_fallthru
          _
        // Predicated region
        $region21: #{tpu_custom_call.1} parent=11 // pred_check
          %p174 = pneg %p107
        $region22: #{tpu_custom_call.1} parent=11 // pred_check_branch
          %176 = sbr.rel (%p174) target = $region24
        $region23: #{tpu_custom_call.1} parent=11 // pred_region
          %s178 = ssub.s32 1024, 1024
          %179 = vsyncadd [#allocation9], %s178
          %s180 = sshll.u32 [#allocation8], 4
          %s181 = int_to_ptr.vmem [resolvable:$true] %s180
          %186 = dma.hbm_to_vmem [thread:$0]  %s3, 1024, %s181, [#allocation9], 64, 64, 4
        $region24: #{tpu_custom_call.1} parent=11 // pred_fallthru
          _
      $region12: #{tpu_custom_call.1} parent=5 // pred_fallthru
        _
      %p187 = scmp.lt.s32.totalorder %s18, 2
      // Predicated region
      $region25: #{tpu_custom_call.1} parent=5 // pred_check
        %p188 = pneg %p187
      $region26: #{tpu_custom_call.1} parent=5 // pred_check_branch
        %190 = sbr.rel (%p188) target = $region28
      $region27: #{tpu_custom_call.1} parent=5 // pred_region
        // Predicated region
        $region29: #{tpu_custom_call.1} parent=27 // pred_check
          %p191 = pneg %p38
        $region30: #{tpu_custom_call.1} parent=27 // pred_check_branch
          %193 = sbr.rel (%p191) target = $region32
        $region31: #{tpu_custom_call.1} parent=27 // pred_region
          %s194 = sand.u32 %s28, 1
          %s195 = scalar_lea.sflag [#allocation3], %s194
          %s196 = sand.u32 %s28, 1
          %s197 = smul.addr %s196, 4
          %s198 = scalar_lea.vmem [#allocation2], %s197
          %s200 = ssub.s32 64, 64
          %201 = vsyncadd %s195, %s200
          %s202 = smul.addr %s18, 64
          %s203 = scalar_lea.hbm %s0, %s202
          %s205 = sshll.u32 %s198, 4
          %s206 = int_to_ptr.vmem [resolvable:$true] %s205
          %208 = dma.hbm_to_vmem [thread:$0]  %s203, 64, %s206, %s195
        $region32: #{tpu_custom_call.1} parent=27 // pred_fallthru
          _
      $region28: #{tpu_custom_call.1} parent=5 // pred_fallthru
        _
      %p209 = scmp.le.s32.totalorder 1, %s18
      %p210 = scmp.lt.s32.totalorder %s18, 3
      %p211 = pnand %p209, %p210
      %p212 = pneg %p211
      // Predicated region
      $region33: #{tpu_custom_call.1} parent=5 // pred_check
        _
      $region34: #{tpu_custom_call.1} parent=5 // pred_check_branch
        %214 = sbr.rel (%p211) target = $region36
      $region35: #{tpu_custom_call.1} parent=5 // pred_region
        %s215 = ssub.s32 %s18, 1
        %s216 = sand.u32 %s31, 1
        %s217 = scalar_lea.sflag [#allocation3], %s216
        %s218 = sand.u32 %s31, 1
        %s219 = smul.addr %s218, 4
        %s220 = scalar_lea.vmem [#allocation2], %s219
        // Predicated region
        $region37: #{tpu_custom_call.1} parent=35 // pred_check
          %p221 = pneg %p44
        $region38: #{tpu_custom_call.1} parent=35 // pred_check_branch
          %223 = sbr.rel (%p221) target = $region40
        $region39: #{tpu_custom_call.1} parent=35 // pred_region
          %224 = dma.done %s217, 64
        $region40: #{tpu_custom_call.1} parent=35 // pred_fallthru
          _
        // Predicated region
        $region41: #{tpu_custom_call.1} parent=35 // pred_check
          %p225 = pneg %p65
        $region42: #{tpu_custom_call.1} parent=35 // pred_check_branch
          %227 = sbr.rel (%p225) target = $region44
        $region43: #{tpu_custom_call.1} parent=35 // pred_region
          %228 = dma.done [#allocation6], 1024
        $region44: #{tpu_custom_call.1} parent=35 // pred_fallthru
          _
        // Predicated region
        $region45: #{tpu_custom_call.1} parent=35 // pred_check
          %p229 = pneg %p86
        $region46: #{tpu_custom_call.1} parent=35 // pred_check_branch
          %231 = sbr.rel (%p229) target = $region48
        $region47: #{tpu_custom_call.1} parent=35 // pred_region
          %232 = dma.done [#allocation6], 1024
        $region48: #{tpu_custom_call.1} parent=35 // pred_fallthru
          _
        // Predicated region
        $region49: #{tpu_custom_call.1} parent=35 // pred_check
          %p233 = pneg %p107
        $region50: #{tpu_custom_call.1} parent=35 // pred_check_branch
          %235 = sbr.rel (%p233) target = $region52
        $region51: #{tpu_custom_call.1} parent=35 // pred_region
          %236 = dma.done [#allocation9], 1024
        $region52: #{tpu_custom_call.1} parent=35 // pred_fallthru
          _
        %s237 = sand.u32 %s31, 1
        %s238 = scalar_lea.sflag [#allocation3], %s237
        %s239 = sand.u32 %s31, 1
        %s240 = smul.addr %s239, 4
        %s241 = scalar_lea.vmem [#allocation2], %s240
        %p242 = pneg %p44
        %p243 = pneg %p41
        %p244 = pneg %p65
        %p245 = pneg %p62
        %p246 = pneg %p86
        %p247 = pneg %p83
        %p248 = pneg %p107
        %p249 = pneg %p104
        %p250 = pneg %p133
        %p251 = pneg %p130
        %s252 = sand.u32 %s120, 1
        %s253 = scalar_lea.sflag [#allocation4], %s252
        %s254 = sand.u32 %s120, 1
        %s255 = smul.addr %s254, 8
        %s256 = scalar_lea.vmem [#allocation10], %s255
        %v258 = vld [vmem:[%s220] sm:$0xf]
        %v259 = vld [vmem:[#allocation5] sm:$0xf]
        %v260 = vld [vmem:[#allocation5 + $0x4] sm:$0xf]
        %v261 = vld [vmem:[#allocation5 + $0x8] sm:$0xf]
        %v262 = vld [vmem:[#allocation5 + $0xc] sm:$0xf]
        %v263 = vld [vmem:[#allocation5 + $0x10] sm:$0xf]
        %v264 = vld [vmem:[#allocation5 + $0x14] sm:$0xf]
        %v265 = vld [vmem:[#allocation5 + $0x18] sm:$0xf]
        %v266 = vld [vmem:[#allocation5 + $0x1c] sm:$0xf]
        %v267 = vld [vmem:[#allocation5 + $0x20] sm:$0xf]
        %v268 = vld [vmem:[#allocation5 + $0x24] sm:$0xf]
        %v269 = vld [vmem:[#allocation5 + $0x28] sm:$0xf]
        %v270 = vld [vmem:[#allocation5 + $0x2c] sm:$0xf]
        %v271 = vld [vmem:[#allocation5 + $0x30] sm:$0xf]
        %v272 = vld [vmem:[#allocation5 + $0x34] sm:$0xf]
        %v273 = vld [vmem:[#allocation5 + $0x38] sm:$0xf]
        %v274 = vld [vmem:[#allocation5 + $0x3c] sm:$0xf]
        %v291 = vunpack.c.l.b16 %v259
        %v292 = vunpack.c.l.b16 %v260
        %v293 = vunpack.c.l.b16 %v261
        %v294 = vunpack.c.l.b16 %v262
        %v295 = vunpack.c.l.b16 %v263
        %v296 = vunpack.c.l.b16 %v264
        %v297 = vunpack.c.l.b16 %v265
        %v298 = vunpack.c.l.b16 %v266
        %v299 = vunpack.c.l.b16 %v267
        %v300 = vunpack.c.l.b16 %v268
        %v301 = vunpack.c.l.b16 %v269
        %v302 = vunpack.c.l.b16 %v270
        %v303 = vunpack.c.l.b16 %v271
        %v304 = vunpack.c.l.b16 %v272
        %v305 = vunpack.c.l.b16 %v273
        %v306 = vunpack.c.l.b16 %v274
        %v307 = vpack.c.b16 %v292, %v291
        %v308 = vpack.c.b16 %v294, %v293
        %v309 = vpack.c.b16 %v296, %v295
        %v310 = vpack.c.b16 %v298, %v297
        %v311 = vpack.c.b16 %v300, %v299
        %v312 = vpack.c.b16 %v302, %v301
        %v313 = vpack.c.b16 %v304, %v303
        %v314 = vpack.c.b16 %v306, %v305
        %323 = vmatprep.subr.bf16.mxu0 0
        %324 = vmatpush1.bf16.msra.mxu0 %v314
        %325 = vmatprep.subr.bf16.mxu0 0
        %326 = vmatpush1.bf16.msra.mxu0 %v313
        %327 = vmatprep.subr.bf16.mxu0 0
        %328 = vmatpush1.bf16.msra.mxu0 %v312
        %329 = vmatprep.subr.bf16.mxu0 0
        %330 = vmatpush1.bf16.msra.mxu0 %v311
        %331 = vmatprep.subr.bf16.mxu0 0
        %332 = vmatpush1.bf16.msra.mxu0 %v310
        %333 = vmatprep.subr.bf16.mxu0 0
        %334 = vmatpush1.bf16.msra.mxu0 %v309
        %335 = vmatprep.subr.bf16.mxu0 0
        %336 = vmatpush1.bf16.msra.mxu0 %v308
        %337 = vmatprep.subr.bf16.mxu0 0
        %338 = vmatpush1.bf16.msra.mxu0 %v307
        %339 = vmatprep.subr.bf16.mxu0 0
        %340 = vmatpush2.bf16.msra.mxu0 0
        %341 = vmatprep.subr.bf16.mxu0 0
        %342 = vmatpush2.bf16.msra.mxu0 0
        %343 = vmatprep.subr.bf16.mxu0 0
        %344 = vmatpush2.bf16.msra.mxu0 0
        %345 = vmatprep.subr.bf16.mxu0 0
        %346 = vmatpush2.bf16.msra.mxu0 0
        %347 = vmatprep.subr.bf16.mxu0 0
        %348 = vmatpush2.bf16.msra.mxu0 0
        %349 = vmatprep.subr.bf16.mxu0 0
        %350 = vmatpush2.bf16.msra.mxu0 0
        %351 = vmatprep.subr.bf16.mxu0 0
        %352 = vmatpush2.bf16.msra.mxu0 0
        %353 = vmatprep.subr.bf16.mxu0 0
        %354 = vmatpush2.bf16.msra.mxu0 0
        %355 = vmatprep.mubr.bf16.mxu0 0
        %356 = vmatmul.mubr.bf16.gmra.mxu0 %v258
        %v357 = vpop.f32.mrf.mxu0
        %v358 = vadd.f32 0.0, %v357
        %v359 = vpop.f32.mrf.mxu0
        %v360 = vpop.f32.mrf.mxu0
        %v361 = vpop.f32.mrf.mxu0
        %362 = vdwg.mxu0
        %v363 = vpack.c.bf16 %v358, %v358
        %v364 = vld [vmem:[#allocation7] sm:$0xf]
        %v365 = vld [vmem:[#allocation7 + $0x4] sm:$0xf]
        %v366 = vld [vmem:[#allocation7 + $0x8] sm:$0xf]
        %v367 = vld [vmem:[#allocation7 + $0xc] sm:$0xf]
        %v368 = vld [vmem:[#allocation7 + $0x10] sm:$0xf]
        %v369 = vld [vmem:[#allocation7 + $0x14] sm:$0xf]
        %v370 = vld [vmem:[#allocation7 + $0x18] sm:$0xf]
        %v371 = vld [vmem:[#allocation7 + $0x1c] sm:$0xf]
        %v372 = vld [vmem:[#allocation7 + $0x20] sm:$0xf]
        %v373 = vld [vmem:[#allocation7 + $0x24] sm:$0xf]
        %v374 = vld [vmem:[#allocation7 + $0x28] sm:$0xf]
        %v375 = vld [vmem:[#allocation7 + $0x2c] sm:$0xf]
        %v376 = vld [vmem:[#allocation7 + $0x30] sm:$0xf]
        %v377 = vld [vmem:[#allocation7 + $0x34] sm:$0xf]
        %v378 = vld [vmem:[#allocation7 + $0x38] sm:$0xf]
        %v379 = vld [vmem:[#allocation7 + $0x3c] sm:$0xf]
        %v396 = vunpack.c.l.b16 %v364
        %v397 = vunpack.c.l.b16 %v365
        %v398 = vunpack.c.l.b16 %v366
        %v399 = vunpack.c.l.b16 %v367
        %v400 = vunpack.c.l.b16 %v368
        %v401 = vunpack.c.l.b16 %v369
        %v402 = vunpack.c.l.b16 %v370
        %v403 = vunpack.c.l.b16 %v371
        %v404 = vunpack.c.l.b16 %v372
        %v405 = vunpack.c.l.b16 %v373
        %v406 = vunpack.c.l.b16 %v374
        %v407 = vunpack.c.l.b16 %v375
        %v408 = vunpack.c.l.b16 %v376
        %v409 = vunpack.c.l.b16 %v377
        %v410 = vunpack.c.l.b16 %v378
        %v411 = vunpack.c.l.b16 %v379
        %v412 = vpack.c.b16 %v397, %v396
        %v413 = vpack.c.b16 %v399, %v398
        %v414 = vpack.c.b16 %v401, %v400
        %v415 = vpack.c.b16 %v403, %v402
        %v416 = vpack.c.b16 %v405, %v404
        %v417 = vpack.c.b16 %v407, %v406
        %v418 = vpack.c.b16 %v409, %v408
        %v419 = vpack.c.b16 %v411, %v410
        %428 = vmatprep.subr.bf16.mxu0 0
        %429 = vmatpush1.bf16.msra.mxu0 %v419
        %430 = vmatprep.subr.bf16.mxu0 0
        %431 = vmatpush1.bf16.msra.mxu0 %v418
        %432 = vmatprep.subr.bf16.mxu0 0
        %433 = vmatpush1.bf16.msra.mxu0 %v417
        %434 = vmatprep.subr.bf16.mxu0 0
        %435 = vmatpush1.bf16.msra.mxu0 %v416
        %436 = vmatprep.subr.bf16.mxu0 0
        %437 = vmatpush1.bf16.msra.mxu0 %v415
        %438 = vmatprep.subr.bf16.mxu0 0
        %439 = vmatpush1.bf16.msra.mxu0 %v414
        %440 = vmatprep.subr.bf16.mxu0 0
        %441 = vmatpush1.bf16.msra.mxu0 %v413
        %442 = vmatprep.subr.bf16.mxu0 0
        %443 = vmatpush1.bf16.msra.mxu0 %v412
        %444 = vmatprep.subr.bf16.mxu0 0
        %445 = vmatpush2.bf16.msra.mxu0 0
        %446 = vmatprep.subr.bf16.mxu0 0
        %447 = vmatpush2.bf16.msra.mxu0 0
        %448 = vmatprep.subr.bf16.mxu0 0
        %449 = vmatpush2.bf16.msra.mxu0 0
        %450 = vmatprep.subr.bf16.mxu0 0
        %451 = vmatpush2.bf16.msra.mxu0 0
        %452 = vmatprep.subr.bf16.mxu0 0
        %453 = vmatpush2.bf16.msra.mxu0 0
        %454 = vmatprep.subr.bf16.mxu0 0
        %455 = vmatpush2.bf16.msra.mxu0 0
        %456 = vmatprep.subr.bf16.mxu0 0
        %457 = vmatpush2.bf16.msra.mxu0 0
        %458 = vmatprep.subr.bf16.mxu0 0
        %459 = vmatpush2.bf16.msra.mxu0 0
        %460 = vmatprep.mubr.bf16.mxu0 0
        %461 = vmatmul.mubr.bf16.gmra.mxu0 %v258
        %v462 = vpop.f32.mrf.mxu0
        %v463 = vadd.f32 0.0, %v462
        %v464 = vpop.f32.mrf.mxu0
        %v465 = vpop.f32.mrf.mxu0
        %v466 = vpop.f32.mrf.mxu0
        %467 = vdwg.mxu0
        %v468 = vpack.c.bf16 %v463, %v463
        %v469 = vld [vmem:[#allocation8] sm:$0xf]
        %v470 = vld [vmem:[#allocation8 + $0x4] sm:$0xf]
        %v471 = vld [vmem:[#allocation8 + $0x8] sm:$0xf]
        %v472 = vld [vmem:[#allocation8 + $0xc] sm:$0xf]
        %v473 = vld [vmem:[#allocation8 + $0x10] sm:$0xf]
        %v474 = vld [vmem:[#allocation8 + $0x14] sm:$0xf]
        %v475 = vld [vmem:[#allocation8 + $0x18] sm:$0xf]
        %v476 = vld [vmem:[#allocation8 + $0x1c] sm:$0xf]
        %v477 = vld [vmem:[#allocation8 + $0x20] sm:$0xf]
        %v478 = vld [vmem:[#allocation8 + $0x24] sm:$0xf]
        %v479 = vld [vmem:[#allocation8 + $0x28] sm:$0xf]
        %v480 = vld [vmem:[#allocation8 + $0x2c] sm:$0xf]
        %v481 = vld [vmem:[#allocation8 + $0x30] sm:$0xf]
        %v482 = vld [vmem:[#allocation8 + $0x34] sm:$0xf]
        %v483 = vld [vmem:[#allocation8 + $0x38] sm:$0xf]
        %v484 = vld [vmem:[#allocation8 + $0x3c] sm:$0xf]
        %v501 = vunpack.c.l.b16 %v469
        %v502 = vunpack.c.l.b16 %v470
        %v503 = vunpack.c.l.b16 %v471
        %v504 = vunpack.c.l.b16 %v472
        %v505 = vunpack.c.l.b16 %v473
        %v506 = vunpack.c.l.b16 %v474
        %v507 = vunpack.c.l.b16 %v475
        %v508 = vunpack.c.l.b16 %v476
        %v509 = vunpack.c.l.b16 %v477
        %v510 = vunpack.c.l.b16 %v478
        %v511 = vunpack.c.l.b16 %v479
        %v512 = vunpack.c.l.b16 %v480
        %v513 = vunpack.c.l.b16 %v481
        %v514 = vunpack.c.l.b16 %v482
        %v515 = vunpack.c.l.b16 %v483
        %v516 = vunpack.c.l.b16 %v484
        %v517 = vpack.c.b16 %v502, %v501
        %v518 = vpack.c.b16 %v504, %v503
        %v519 = vpack.c.b16 %v506, %v505
        %v520 = vpack.c.b16 %v508, %v507
        %v521 = vpack.c.b16 %v510, %v509
        %v522 = vpack.c.b16 %v512, %v511
        %v523 = vpack.c.b16 %v514, %v513
        %v524 = vpack.c.b16 %v516, %v515
        %533 = vmatprep.subr.bf16.mxu0 0
        %534 = vmatpush1.bf16.msra.mxu0 %v524
        %535 = vmatprep.subr.bf16.mxu0 0
        %536 = vmatpush1.bf16.msra.mxu0 %v523
        %537 = vmatprep.subr.bf16.mxu0 0
        %538 = vmatpush1.bf16.msra.mxu0 %v522
        %539 = vmatprep.subr.bf16.mxu0 0
        %540 = vmatpush1.bf16.msra.mxu0 %v521
        %541 = vmatprep.subr.bf16.mxu0 0
        %542 = vmatpush1.bf16.msra.mxu0 %v520
        %543 = vmatprep.subr.bf16.mxu0 0
        %544 = vmatpush1.bf16.msra.mxu0 %v519
        %545 = vmatprep.subr.bf16.mxu0 0
        %546 = vmatpush1.bf16.msra.mxu0 %v518
        %547 = vmatprep.subr.bf16.mxu0 0
        %548 = vmatpush1.bf16.msra.mxu0 %v517
        %549 = vmatprep.subr.bf16.mxu0 0
        %550 = vmatpush2.bf16.msra.mxu0 0
        %551 = vmatprep.subr.bf16.mxu0 0
        %552 = vmatpush2.bf16.msra.mxu0 0
        %553 = vmatprep.subr.bf16.mxu0 0
        %554 = vmatpush2.bf16.msra.mxu0 0
        %555 = vmatprep.subr.bf16.mxu0 0
        %556 = vmatpush2.bf16.msra.mxu0 0
        %557 = vmatprep.subr.bf16.mxu0 0
        %558 = vmatpush2.bf16.msra.mxu0 0
        %559 = vmatprep.subr.bf16.mxu0 0
        %560 = vmatpush2.bf16.msra.mxu0 0
        %561 = vmatprep.subr.bf16.mxu0 0
        %562 = vmatpush2.bf16.msra.mxu0 0
        %563 = vmatprep.subr.bf16.mxu0 0
        %564 = vmatpush2.bf16.msra.mxu0 0
        %565 = vmatprep.mubr.bf16.mxu0 0
        %566 = vmatmul.mubr.bf16.gmra.mxu0 %v258
        %v567 = vpop.f32.mrf.mxu0
        %v568 = vadd.f32 0.0, %v567
        %v569 = vpop.f32.mrf.mxu0
        %v570 = vpop.f32.mrf.mxu0
        %v571 = vpop.f32.mrf.mxu0
        %572 = vdwg.mxu0
        %v573 = vpack.c.bf16 %v568, %v568
        %vm574 = vcmask 64512
        %v576 = vsel %vm574, %v363, 0
        %v579 = vsel %vm574, %v468, 0
        %581 = vmatprep.subr.bf16.mxu0 0
        %582 = vmatpush1.bf16.xpose.msra.mxu0 0
        %583 = vmatprep.subr.bf16.mxu0 0
        %584 = vmatpush1.bf16.xpose.msra.mxu0 0
        %585 = vmatprep.subr.bf16.mxu0 0
        %586 = vmatpush1.bf16.xpose.msra.mxu0 0
        %587 = vmatprep.subr.bf16.mxu0 0
        %588 = vmatpush1.bf16.xpose.msra.mxu0 0
        %589 = vmatprep.subr.bf16.mxu0 0
        %590 = vmatpush1.bf16.xpose.msra.mxu0 0
        %591 = vmatprep.subr.bf16.mxu0 0
        %592 = vmatpush1.bf16.xpose.msra.mxu0 0
        %593 = vmatprep.subr.bf16.mxu0 0
        %594 = vmatpush1.bf16.xpose.msra.mxu0 0
        %595 = vmatprep.subr.bf16.mxu0 0
        %596 = vmatpush1.bf16.xpose.msra.mxu0 %v579
        %597 = vmatprep.subr.bf16.mxu0 0
        %598 = vmatpush2.bf16.xpose.msra.mxu0 0
        %599 = vmatprep.subr.bf16.mxu0 0
        %600 = vmatpush2.bf16.xpose.msra.mxu0 0
        %601 = vmatprep.subr.bf16.mxu0 0
        %602 = vmatpush2.bf16.xpose.msra.mxu0 0
        %603 = vmatprep.subr.bf16.mxu0 0
        %604 = vmatpush2.bf16.xpose.msra.mxu0 0
        %605 = vmatprep.subr.bf16.mxu0 0
        %606 = vmatpush2.bf16.xpose.msra.mxu0 0
        %607 = vmatprep.subr.bf16.mxu0 0
        %608 = vmatpush2.bf16.xpose.msra.mxu0 0
        %609 = vmatprep.subr.bf16.mxu0 0
        %610 = vmatpush2.bf16.xpose.msra.mxu0 0
        %611 = vmatprep.subr.bf16.mxu0 0
        %612 = vmatpush2.bf16.xpose.msra.mxu0 0
        %613 = vmatprep.mubr.bf16.mxu0 0
        %614 = vmatmul.mubr.bf16.gmra.mxu0 %v576
        %v615 = vpop.f32.mrf.mxu0
        %v616 = vadd.f32 0.0, %v615
        %v617 = vpop.f32.mrf.mxu0
        %v618 = vpop.f32.mrf.mxu0
        %v619 = vpop.f32.mrf.mxu0
        %620 = vdwg.mxu0
        %v621 = vsel %vm574, %v616, -inf
        %622 = vmax.xlane.f32.xlu0 %v621
        %v623 = vpop.xlane.xlu0 %622
        %v624 = vsub.f32 %v616, %v623
        %v625 = vmul.f32 %v624, 1.442695
        %v626 = vpow.pop %v625
        %v627 = vsel %vm574, %v626, 0.0
        %628 = vadd.xlane.f32.xlu0 %v627
        %v629 = vpop.xlane.xlu0 %628
        %v630 = vrcp.pop %v629
        %v631 = vmul.f32 %v626, %v630
        %v632 = vpack.c.bf16 %v631, %v631
        %v634 = vsel %vm574, %v632, 0
        %vm636 = vcmask 1043456
        %v638 = vsel %vm636, %v573, 0
        %640 = vmatprep.subr.bf16.mxu0 0
        %641 = vmatpush1.bf16.msra.mxu0 0
        %642 = vmatprep.subr.bf16.mxu0 0
        %643 = vmatpush1.bf16.msra.mxu0 0
        %644 = vmatprep.subr.bf16.mxu0 0
        %645 = vmatpush1.bf16.msra.mxu0 0
        %646 = vmatprep.subr.bf16.mxu0 0
        %647 = vmatpush1.bf16.msra.mxu0 0
        %648 = vmatprep.subr.bf16.mxu0 0
        %649 = vmatpush1.bf16.msra.mxu0 0
        %650 = vmatprep.subr.bf16.mxu0 0
        %651 = vmatpush1.bf16.msra.mxu0 0
        %652 = vmatprep.subr.bf16.mxu0 0
        %653 = vmatpush1.bf16.msra.mxu0 0
        %654 = vmatprep.subr.bf16.mxu0 0
        %655 = vmatpush1.bf16.msra.mxu0 %v638
        %656 = vmatprep.subr.bf16.mxu0 0
        %657 = vmatpush2.bf16.msra.mxu0 0
        %658 = vmatprep.subr.bf16.mxu0 0
        %659 = vmatpush2.bf16.msra.mxu0 0
        %660 = vmatprep.subr.bf16.mxu0 0
        %661 = vmatpush2.bf16.msra.mxu0 0
        %662 = vmatprep.subr.bf16.mxu0 0
        %663 = vmatpush2.bf16.msra.mxu0 0
        %664 = vmatprep.subr.bf16.mxu0 0
        %665 = vmatpush2.bf16.msra.mxu0 0
        %666 = vmatprep.subr.bf16.mxu0 0
        %667 = vmatpush2.bf16.msra.mxu0 0
        %668 = vmatprep.subr.bf16.mxu0 0
        %669 = vmatpush2.bf16.msra.mxu0 0
        %670 = vmatprep.subr.bf16.mxu0 0
        %671 = vmatpush2.bf16.msra.mxu0 0
        %672 = vmatprep.mubr.bf16.mxu0 0
        %673 = vmatmul.mubr.bf16.gmra.mxu0 %v634
        %v674 = vpop.f32.mrf.mxu0
        %v675 = vadd.f32 0.0, %v674
        %v676 = vpop.f32.mrf.mxu0
        %v677 = vpop.f32.mrf.mxu0
        %v678 = vpop.f32.mrf.mxu0
        %679 = vdwg.mxu0
        %681 = vrot.lane.b32.xlu0 %v363, 120
        %v682 = vpop.permute.xlu0 %681
        %684 = vrot.lane.b32.xlu0 %v468, 120
        %v685 = vpop.permute.xlu0 %684
        %v687 = vsel %vm574, %v682, 0
        %v690 = vsel %vm574, %v685, 0
        %692 = vmatprep.subr.bf16.mxu0 0
        %693 = vmatpush1.bf16.xpose.msra.mxu0 0
        %694 = vmatprep.subr.bf16.mxu0 0
        %695 = vmatpush1.bf16.xpose.msra.mxu0 0
        %696 = vmatprep.subr.bf16.mxu0 0
        %697 = vmatpush1.bf16.xpose.msra.mxu0 0
        %698 = vmatprep.subr.bf16.mxu0 0
        %699 = vmatpush1.bf16.xpose.msra.mxu0 0
        %700 = vmatprep.subr.bf16.mxu0 0
        %701 = vmatpush1.bf16.xpose.msra.mxu0 0
        %702 = vmatprep.subr.bf16.mxu0 0
        %703 = vmatpush1.bf16.xpose.msra.mxu0 0
        %704 = vmatprep.subr.bf16.mxu0 0
        %705 = vmatpush1.bf16.xpose.msra.mxu0 0
        %706 = vmatprep.subr.bf16.mxu0 0
        %707 = vmatpush1.bf16.xpose.msra.mxu0 %v690
        %708 = vmatprep.subr.bf16.mxu0 0
        %709 = vmatpush2.bf16.xpose.msra.mxu0 0
        %710 = vmatprep.subr.bf16.mxu0 0
        %711 = vmatpush2.bf16.xpose.msra.mxu0 0
        %712 = vmatprep.subr.bf16.mxu0 0
        %713 = vmatpush2.bf16.xpose.msra.mxu0 0
        %714 = vmatprep.subr.bf16.mxu0 0
        %715 = vmatpush2.bf16.xpose.msra.mxu0 0
        %716 = vmatprep.subr.bf16.mxu0 0
        %717 = vmatpush2.bf16.xpose.msra.mxu0 0
        %718 = vmatprep.subr.bf16.mxu0 0
        %719 = vmatpush2.bf16.xpose.msra.mxu0 0
        %720 = vmatprep.subr.bf16.mxu0 0
        %721 = vmatpush2.bf16.xpose.msra.mxu0 0
        %722 = vmatprep.subr.bf16.mxu0 0
        %723 = vmatpush2.bf16.xpose.msra.mxu0 0
        %724 = vmatprep.mubr.bf16.mxu0 0
        %725 = vmatmul.mubr.bf16.gmra.mxu0 %v687
        %v726 = vpop.f32.mrf.mxu0
        %v727 = vadd.f32 0.0, %v726
        %v728 = vpop.f32.mrf.mxu0
        %v729 = vpop.f32.mrf.mxu0
        %v730 = vpop.f32.mrf.mxu0
        %731 = vdwg.mxu0
        %v732 = vsel %vm574, %v727, -inf
        %733 = vmax.xlane.f32.xlu0 %v732
        %v734 = vpop.xlane.xlu0 %733
        %v735 = vsub.f32 %v727, %v734
        %v736 = vmul.f32 %v735, 1.442695
        %v737 = vpow.pop %v736
        %v738 = vsel %vm574, %v737, 0.0
        %739 = vadd.xlane.f32.xlu0 %v738
        %v740 = vpop.xlane.xlu0 %739
        %v741 = vrcp.pop %v740
        %v742 = vmul.f32 %v737, %v741
        %v743 = vpack.c.bf16 %v742, %v742
        %745 = vrot.lane.b32.xlu0 %v573, 120
        %v746 = vpop.permute.xlu0 %745
        %v748 = vsel %vm574, %v743, 0
        %v751 = vsel %vm636, %v746, 0
        %753 = vmatprep.subr.bf16.mxu0 0
        %754 = vmatpush1.bf16.msra.mxu0 0
        %755 = vmatprep.subr.bf16.mxu0 0
        %756 = vmatpush1.bf16.msra.mxu0 0
        %757 = vmatprep.subr.bf16.mxu0 0
        %758 = vmatpush1.bf16.msra.mxu0 0
        %759 = vmatprep.subr.bf16.mxu0 0
        %760 = vmatpush1.bf16.msra.mxu0 0
        %761 = vmatprep.subr.bf16.mxu0 0
        %762 = vmatpush1.bf16.msra.mxu0 0
        %763 = vmatprep.subr.bf16.mxu0 0
        %764 = vmatpush1.bf16.msra.mxu0 0
        %765 = vmatprep.subr.bf16.mxu0 0
        %766 = vmatpush1.bf16.msra.mxu0 0
        %767 = vmatprep.subr.bf16.mxu0 0
        %768 = vmatpush1.bf16.msra.mxu0 %v751
        %769 = vmatprep.subr.bf16.mxu0 0
        %770 = vmatpush2.bf16.msra.mxu0 0
        %771 = vmatprep.subr.bf16.mxu0 0
        %772 = vmatpush2.bf16.msra.mxu0 0
        %773 = vmatprep.subr.bf16.mxu0 0
        %774 = vmatpush2.bf16.msra.mxu0 0
        %775 = vmatprep.subr.bf16.mxu0 0
        %776 = vmatpush2.bf16.msra.mxu0 0
        %777 = vmatprep.subr.bf16.mxu0 0
        %778 = vmatpush2.bf16.msra.mxu0 0
        %779 = vmatprep.subr.bf16.mxu0 0
        %780 = vmatpush2.bf16.msra.mxu0 0
        %781 = vmatprep.subr.bf16.mxu0 0
        %782 = vmatpush2.bf16.msra.mxu0 0
        %783 = vmatprep.subr.bf16.mxu0 0
        %784 = vmatpush2.bf16.msra.mxu0 0
        %785 = vmatprep.mubr.bf16.mxu0 0
        %786 = vmatmul.mubr.bf16.gmra.mxu0 %v748
        %v787 = vpop.f32.mrf.mxu0
        %v788 = vadd.f32 0.0, %v787
        %v789 = vpop.f32.mrf.mxu0
        %v790 = vpop.f32.mrf.mxu0
        %v791 = vpop.f32.mrf.mxu0
        %792 = vdwg.mxu0
        %793 = vrot.lane.b32.xlu0 %v363, 112
        %v794 = vpop.permute.xlu0 %793
        %795 = vrot.lane.b32.xlu0 %v468, 112
        %v796 = vpop.permute.xlu0 %795
        %v798 = vsel %vm574, %v794, 0
        %v801 = vsel %vm574, %v796, 0
        %803 = vmatprep.subr.bf16.mxu0 0
        %804 = vmatpush1.bf16.xpose.msra.mxu0 0
        %805 = vmatprep.subr.bf16.mxu0 0
        %806 = vmatpush1.bf16.xpose.msra.mxu0 0
        %807 = vmatprep.subr.bf16.mxu0 0
        %808 = vmatpush1.bf16.xpose.msra.mxu0 0
        %809 = vmatprep.subr.bf16.mxu0 0
        %810 = vmatpush1.bf16.xpose.msra.mxu0 0
        %811 = vmatprep.subr.bf16.mxu0 0
        %812 = vmatpush1.bf16.xpose.msra.mxu0 0
        %813 = vmatprep.subr.bf16.mxu0 0
        %814 = vmatpush1.bf16.xpose.msra.mxu0 0
        %815 = vmatprep.subr.bf16.mxu0 0
        %816 = vmatpush1.bf16.xpose.msra.mxu0 0
        %817 = vmatprep.subr.bf16.mxu0 0
        %818 = vmatpush1.bf16.xpose.msra.mxu0 %v801
        %819 = vmatprep.subr.bf16.mxu0 0
        %820 = vmatpush2.bf16.xpose.msra.mxu0 0
        %821 = vmatprep.subr.bf16.mxu0 0
        %822 = vmatpush2.bf16.xpose.msra.mxu0 0
        %823 = vmatprep.subr.bf16.mxu0 0
        %824 = vmatpush2.bf16.xpose.msra.mxu0 0
        %825 = vmatprep.subr.bf16.mxu0 0
        %826 = vmatpush2.bf16.xpose.msra.mxu0 0
        %827 = vmatprep.subr.bf16.mxu0 0
        %828 = vmatpush2.bf16.xpose.msra.mxu0 0
        %829 = vmatprep.subr.bf16.mxu0 0
        %830 = vmatpush2.bf16.xpose.msra.mxu0 0
        %831 = vmatprep.subr.bf16.mxu0 0
        %832 = vmatpush2.bf16.xpose.msra.mxu0 0
        %833 = vmatprep.subr.bf16.mxu0 0
        %834 = vmatpush2.bf16.xpose.msra.mxu0 0
        %835 = vmatprep.mubr.bf16.mxu0 0
        %836 = vmatmul.mubr.bf16.gmra.mxu0 %v798
        %v837 = vpop.f32.mrf.mxu0
        %v838 = vadd.f32 0.0, %v837
        %v839 = vpop.f32.mrf.mxu0
        %v840 = vpop.f32.mrf.mxu0
        %v841 = vpop.f32.mrf.mxu0
        %842 = vdwg.mxu0
        %v843 = vsel %vm574, %v838, -inf
        %844 = vmax.xlane.f32.xlu0 %v843
        %v845 = vpop.xlane.xlu0 %844
        %v846 = vsub.f32 %v838, %v845
        %v847 = vmul.f32 %v846, 1.442695
        %v848 = vpow.pop %v847
        %v849 = vsel %vm574, %v848, 0.0
        %850 = vadd.xlane.f32.xlu0 %v849
        %v851 = vpop.xlane.xlu0 %850
        %v852 = vrcp.pop %v851
        %v853 = vmul.f32 %v848, %v852
        %v854 = vpack.c.bf16 %v853, %v853
        %855 = vrot.lane.b32.xlu0 %v573, 112
        %v856 = vpop.permute.xlu0 %855
        %v858 = vsel %vm574, %v854, 0
        %v861 = vsel %vm636, %v856, 0
        %863 = vmatprep.subr.bf16.mxu0 0
        %864 = vmatpush1.bf16.msra.mxu0 0
        %865 = vmatprep.subr.bf16.mxu0 0
        %866 = vmatpush1.bf16.msra.mxu0 0
        %867 = vmatprep.subr.bf16.mxu0 0
        %868 = vmatpush1.bf16.msra.mxu0 0
        %869 = vmatprep.subr.bf16.mxu0 0
        %870 = vmatpush1.bf16.msra.mxu0 0
        %871 = vmatprep.subr.bf16.mxu0 0
        %872 = vmatpush1.bf16.msra.mxu0 0
        %873 = vmatprep.subr.bf16.mxu0 0
        %874 = vmatpush1.bf16.msra.mxu0 0
        %875 = vmatprep.subr.bf16.mxu0 0
        %876 = vmatpush1.bf16.msra.mxu0 0
        %877 = vmatprep.subr.bf16.mxu0 0
        %878 = vmatpush1.bf16.msra.mxu0 %v861
        %879 = vmatprep.subr.bf16.mxu0 0
        %880 = vmatpush2.bf16.msra.mxu0 0
        %881 = vmatprep.subr.bf16.mxu0 0
        %882 = vmatpush2.bf16.msra.mxu0 0
        %883 = vmatprep.subr.bf16.mxu0 0
        %884 = vmatpush2.bf16.msra.mxu0 0
        %885 = vmatprep.subr.bf16.mxu0 0
        %886 = vmatpush2.bf16.msra.mxu0 0
        %887 = vmatprep.subr.bf16.mxu0 0
        %888 = vmatpush2.bf16.msra.mxu0 0
        %889 = vmatprep.subr.bf16.mxu0 0
        %890 = vmatpush2.bf16.msra.mxu0 0
        %891 = vmatprep.subr.bf16.mxu0 0
        %892 = vmatpush2.bf16.msra.mxu0 0
        %893 = vmatprep.subr.bf16.mxu0 0
        %894 = vmatpush2.bf16.msra.mxu0 0
        %895 = vmatprep.mubr.bf16.mxu0 0
        %896 = vmatmul.mubr.bf16.gmra.mxu0 %v858
        %v897 = vpop.f32.mrf.mxu0
        %v898 = vadd.f32 0.0, %v897
        %v899 = vpop.f32.mrf.mxu0
        %v900 = vpop.f32.mrf.mxu0
        %v901 = vpop.f32.mrf.mxu0
        %902 = vdwg.mxu0
        %903 = vrot.lane.b32.xlu0 %v363, 104
        %v904 = vpop.permute.xlu0 %903
        %905 = vrot.lane.b32.xlu0 %v468, 104
        %v906 = vpop.permute.xlu0 %905
        %v908 = vsel %vm574, %v904, 0
        %v911 = vsel %vm574, %v906, 0
        %913 = vmatprep.subr.bf16.mxu0 0
        %914 = vmatpush1.bf16.xpose.msra.mxu0 0
        %915 = vmatprep.subr.bf16.mxu0 0
        %916 = vmatpush1.bf16.xpose.msra.mxu0 0
        %917 = vmatprep.subr.bf16.mxu0 0
        %918 = vmatpush1.bf16.xpose.msra.mxu0 0
        %919 = vmatprep.subr.bf16.mxu0 0
        %920 = vmatpush1.bf16.xpose.msra.mxu0 0
        %921 = vmatprep.subr.bf16.mxu0 0
        %922 = vmatpush1.bf16.xpose.msra.mxu0 0
        %923 = vmatprep.subr.bf16.mxu0 0
        %924 = vmatpush1.bf16.xpose.msra.mxu0 0
        %925 = vmatprep.subr.bf16.mxu0 0
        %926 = vmatpush1.bf16.xpose.msra.mxu0 0
        %927 = vmatprep.subr.bf16.mxu0 0
        %928 = vmatpush1.bf16.xpose.msra.mxu0 %v911
        %929 = vmatprep.subr.bf16.mxu0 0
        %930 = vmatpush2.bf16.xpose.msra.mxu0 0
        %931 = vmatprep.subr.bf16.mxu0 0
        %932 = vmatpush2.bf16.xpose.msra.mxu0 0
        %933 = vmatprep.subr.bf16.mxu0 0
        %934 = vmatpush2.bf16.xpose.msra.mxu0 0
        %935 = vmatprep.subr.bf16.mxu0 0
        %936 = vmatpush2.bf16.xpose.msra.mxu0 0
        %937 = vmatprep.subr.bf16.mxu0 0
        %938 = vmatpush2.bf16.xpose.msra.mxu0 0
        %939 = vmatprep.subr.bf16.mxu0 0
        %940 = vmatpush2.bf16.xpose.msra.mxu0 0
        %941 = vmatprep.subr.bf16.mxu0 0
        %942 = vmatpush2.bf16.xpose.msra.mxu0 0
        %943 = vmatprep.subr.bf16.mxu0 0
        %944 = vmatpush2.bf16.xpose.msra.mxu0 0
        %945 = vmatprep.mubr.bf16.mxu0 0
        %946 = vmatmul.mubr.bf16.gmra.mxu0 %v908
        %v947 = vpop.f32.mrf.mxu0
        %v948 = vadd.f32 0.0, %v947
        %v949 = vpop.f32.mrf.mxu0
        %v950 = vpop.f32.mrf.mxu0
        %v951 = vpop.f32.mrf.mxu0
        %952 = vdwg.mxu0
        %v953 = vsel %vm574, %v948, -inf
        %954 = vmax.xlane.f32.xlu0 %v953
        %v955 = vpop.xlane.xlu0 %954
        %v956 = vsub.f32 %v948, %v955
        %v957 = vmul.f32 %v956, 1.442695
        %v958 = vpow.pop %v957
        %v959 = vsel %vm574, %v958, 0.0
        %960 = vadd.xlane.f32.xlu0 %v959
        %v961 = vpop.xlane.xlu0 %960
        %v962 = vrcp.pop %v961
        %v963 = vmul.f32 %v958, %v962
        %v964 = vpack.c.bf16 %v963, %v963
        %965 = vrot.lane.b32.xlu0 %v573, 104
        %v966 = vpop.permute.xlu0 %965
        %v968 = vsel %vm574, %v964, 0
        %v971 = vsel %vm636, %v966, 0
        %973 = vmatprep.subr.bf16.mxu0 0
        %974 = vmatpush1.bf16.msra.mxu0 0
        %975 = vmatprep.subr.bf16.mxu0 0
        %976 = vmatpush1.bf16.msra.mxu0 0
        %977 = vmatprep.subr.bf16.mxu0 0
        %978 = vmatpush1.bf16.msra.mxu0 0
        %979 = vmatprep.subr.bf16.mxu0 0
        %980 = vmatpush1.bf16.msra.mxu0 0
        %981 = vmatprep.subr.bf16.mxu0 0
        %982 = vmatpush1.bf16.msra.mxu0 0
        %983 = vmatprep.subr.bf16.mxu0 0
        %984 = vmatpush1.bf16.msra.mxu0 0
        %985 = vmatprep.subr.bf16.mxu0 0
        %986 = vmatpush1.bf16.msra.mxu0 0
        %987 = vmatprep.subr.bf16.mxu0 0
        %988 = vmatpush1.bf16.msra.mxu0 %v971
        %989 = vmatprep.subr.bf16.mxu0 0
        %990 = vmatpush2.bf16.msra.mxu0 0
        %991 = vmatprep.subr.bf16.mxu0 0
        %992 = vmatpush2.bf16.msra.mxu0 0
        %993 = vmatprep.subr.bf16.mxu0 0
        %994 = vmatpush2.bf16.msra.mxu0 0
        %995 = vmatprep.subr.bf16.mxu0 0
        %996 = vmatpush2.bf16.msra.mxu0 0
        %997 = vmatprep.subr.bf16.mxu0 0
        %998 = vmatpush2.bf16.msra.mxu0 0
        %999 = vmatprep.subr.bf16.mxu0 0
        %1000 = vmatpush2.bf16.msra.mxu0 0
        %1001 = vmatprep.subr.bf16.mxu0 0
        %1002 = vmatpush2.bf16.msra.mxu0 0
        %1003 = vmatprep.subr.bf16.mxu0 0
        %1004 = vmatpush2.bf16.msra.mxu0 0
        %1005 = vmatprep.mubr.bf16.mxu0 0
        %1006 = vmatmul.mubr.bf16.gmra.mxu0 %v968
        %v1007 = vpop.f32.mrf.mxu0
        %v1008 = vadd.f32 0.0, %v1007
        %v1009 = vpop.f32.mrf.mxu0
        %v1010 = vpop.f32.mrf.mxu0
        %v1011 = vpop.f32.mrf.mxu0
        %1012 = vdwg.mxu0
        %1014 = vrot.lane.b32.xlu0 %v788, 8
        %v1015 = vpop.permute.xlu0 %1014
        %1018 = vrot.lane.b32.xlu0 %v898, 16
        %v1019 = vpop.permute.xlu0 %1018
        %1022 = vrot.lane.b32.xlu0 %v1008, 24
        %v1023 = vpop.permute.xlu0 %1022
        %v1025 = vsel %vm574, %v675, %v1015
        %vm1026 = vcmask 130048
        %v1027 = vsel %vm1026, %v1025, %v1019
        %vm1028 = vcmask 195584
        %v1029 = vsel %vm1028, %v1027, %v1023
        %vm1030 = vcmask 261120
        %v1031 = vsel %vm1030, %v1029, 0.0
        %1032 = vst [vmem:[%s256] sm:$0xff] %v1031
        %s1033 = sand.u32 %s120, 1
        %s1034 = scalar_lea.sflag [#allocation4], %s1033
        %s1035 = sand.u32 %s120, 1
        %s1036 = smul.addr %s1035, 8
        %s1037 = scalar_lea.vmem [#allocation10], %s1036
        // Predicated region
        $region53: #{tpu_custom_call.1} parent=35 // pred_check
          %p1038 = pneg %p130
        $region54: #{tpu_custom_call.1} parent=35 // pred_check_branch
          %1040 = sbr.rel (%p1038) target = $region56
        $region55: #{tpu_custom_call.1} parent=35 // pred_region
          %s1042 = ssub.s32 128, 128
          %1043 = vsyncadd %s1034, %s1042
          %s1044 = smul.addr %s23, 128
          %s1045 = scalar_lea.hbm %s4, %s1044
          %s1047 = sshll.u32 %s1037, 4
          %s1048 = int_to_ptr.vmem [resolvable:$true] %s1047
          %1050 = dma.vmem_to_hbm [thread:$0]  %s1048, 128, %s1045, %s1034
        $region56: #{tpu_custom_call.1} parent=35 // pred_fallthru
          _
      $region36: #{tpu_custom_call.1} parent=5 // pred_fallthru
        _
      %p1051 = scmp.le.s32.totalorder 2, %s18
      // Predicated region
      $region57: #{tpu_custom_call.1} parent=5 // pred_check
        %p1052 = pneg %p1051
      $region58: #{tpu_custom_call.1} parent=5 // pred_check_branch
        %1054 = sbr.rel (%p1052) target = $region60
      $region59: #{tpu_custom_call.1} parent=5 // pred_region
        %s1055 = ssub.s32 %s18, 2
        // Predicated region
        $region61: #{tpu_custom_call.1} parent=59 // pred_check
          %p1056 = pneg %p136
        $region62: #{tpu_custom_call.1} parent=59 // pred_check_branch
          %1058 = sbr.rel (%p1056) target = $region64
        $region63: #{tpu_custom_call.1} parent=59 // pred_region
          %s1059 = sand.u32 %s121, 1
          %s1060 = scalar_lea.sflag [#allocation4], %s1059
          %s1061 = sand.u32 %s121, 1
          %s1062 = smul.addr %s1061, 8
          %s1063 = scalar_lea.vmem [#allocation10], %s1062
          %1064 = dma.done %s1060, 128
        $region64: #{tpu_custom_call.1} parent=59 // pred_fallthru
          _
      $region60: #{tpu_custom_call.1} parent=5 // pred_fallthru
        _
    $region6: #{tpu_custom_call.1} parent=1 // loop_footer
      %s22 = sadd.s32 1, %s18
    $region7: #{tpu_custom_call.1} parent=1 // loop_footer_branch
      %17 = sbr.rel target = $region3
    $region8: #{tpu_custom_call.1} parent=1 // loop_exit
      _
    %1065 = vsyncpa [#allocation3], 1
    %s1066 = scalar_lea.sflag [#allocation3], 1
    %1067 = vsyncpa %s1066, 1
    %1068 = vsyncpa [#allocation6], 1
    %1069 = vsyncpa [#allocation9], 1
    %1070 = vsyncpa [#allocation4], 1
    %s1071 = scalar_lea.sflag [#allocation4], 1
    %1072 = vsyncpa %s1071, 1

</llo_original>
